<compile_context>
chip_gen: v7x
topology: tpu7x:2x2x1
jax: 0.10.0
libtpu: 0.0.40
codegen_flags: <defaults>
</compile_context>

<pallas_src>
import functools
import math

import jax
import jax.numpy as jnp
from jax.experimental import pallas as pl
from jax.experimental.pallas import tpu as pltpu


def _round_up(v, m):
    return ((v + m - 1) // m) * m


# --------------------------------------------------------------------------
# Kernel 1: tiled Linear (+ fused bias [+ bn-bias] [+ LeakyReLU] epilogue)
# --------------------------------------------------------------------------
def _linear_kernel(x_ref, wt_ref, b_ref, o_ref, acc_ref, *, fuse_relu, negative_slope):
    k = pl.program_id(2)

    @pl.when(k == 0)
    def _():
        acc_ref[...] = jnp.zeros_like(acc_ref)

    acc_ref[...] += jnp.dot(
        x_ref[...], wt_ref[...], preferred_element_type=jnp.float32
    )

    @pl.when(k == pl.num_programs(2) - 1)
    def _():
        y = acc_ref[...] + b_ref[...]            # [tm, tn] + [1, tn]
        if fuse_relu:
            y = jnp.where(y >= 0.0, y, negative_slope * y)
        o_ref[...] = y.astype(o_ref.dtype)


# --------------------------------------------------------------------------
# Kernel 2: per-feature masked sum / sum-of-squares over the N points
# --------------------------------------------------------------------------
def _bn_stats_kernel(y_ref, sum_ref, sq_ref, *, tm, n_valid):
    i = pl.program_id(0)

    @pl.when(i == 0)
    def _():
        sum_ref[...] = jnp.zeros_like(sum_ref)
        sq_ref[...] = jnp.zeros_like(sq_ref)

    y = y_ref[...].astype(jnp.float32)                              # [tm, Dp]
    row = jax.lax.broadcasted_iota(jnp.int32, (tm, 1), 0) + i * tm  # [tm, 1]
    ym = jnp.where(row < n_valid, y, 0.0)
    sum_ref[...] += jnp.sum(ym, axis=0, keepdims=True)
    sq_ref[...] += jnp.sum(ym * ym, axis=0, keepdims=True)


# --------------------------------------------------------------------------
# Kernel 3: BN normalize + affine (+ fused LeakyReLU), elementwise over tiles
# --------------------------------------------------------------------------
def _bn_apply_kernel(y_ref, mean_ref, rstd_ref, gamma_ref, beta_ref, o_ref, *,
                     fuse_relu, negative_slope):
    y = y_ref[...].astype(jnp.float32)
    yn = (y - mean_ref[...]) * rstd_ref[...]
    yn = yn * gamma_ref[...] + beta_ref[...]
    if fuse_relu:
        yn = jnp.where(yn >= 0.0, yn, negative_slope * yn)
    o_ref[...] = yn.astype(o_ref.dtype)


# --------------------------------------------------------------------------
# Host wrapper
# --------------------------------------------------------------------------
def unary_block_forward(x, weight, bias, *, use_bn, bn_bias=None, gamma=None,
                        beta=None, eps=1e-5, no_relu=False,
                        negative_slope=0.1):
    """x: [N, in_dim]; weight: [out_dim, in_dim]; bias: [out_dim] -> [N, out_dim]."""
    N, in_dim = x.shape
    out_dim = weight.shape[0]

    # Tile sizes (lane-dense, VMEM-friendly on v5e/v6e/v7x) and padded extents.
    tm = min(256, _round_up(N, 8))
    Mp = _round_up(N, tm)
    tk = min(512, _round_up(in_dim, 128))
    Kp = _round_up(in_dim, tk)
    tn = min(512, _round_up(out_dim, 128))
    Dp = _round_up(out_dim, tn)

    # Zero-pad inputs (zeros in K do not change the dot product).
    x_p = jnp.zeros((Mp, Kp), x.dtype).at[:N, :in_dim].set(x)
    wt_p = jnp.zeros((Kp, Dp), weight.dtype).at[:in_dim, :out_dim].set(weight.T)

    if use_bn:
        b_eff = bias.astype(jnp.float32)
    else:
        b_eff = bias.astype(jnp.float32) + bn_bias.astype(jnp.float32)
    b_p = jnp.zeros((1, Dp), jnp.float32).at[0, :out_dim].set(b_eff)

    fuse_relu_in_linear = (not use_bn) and (not no_relu)

    y_p = pl.pallas_call(
        functools.partial(_linear_kernel,
                          fuse_relu=fuse_relu_in_linear,
                          negative_slope=negative_slope),
        out_shape=jax.ShapeDtypeStruct((Mp, Dp), x.dtype),
        grid_spec=pltpu.PrefetchScalarGridSpec(
            num_scalar_prefetch=0,
            grid=(Mp // tm, Dp // tn, Kp // tk),
            in_specs=[
                pl.BlockSpec((tm, tk), lambda i, j, k: (i, k)),
                pl.BlockSpec((tk, tn), lambda i, j, k: (k, j)),
                pl.BlockSpec((1, tn), lambda i, j, k: (0, j)),
            ],
            out_specs=pl.BlockSpec((tm, tn), lambda i, j, k: (i, j)),
            scratch_shapes=[pltpu.VMEM((tm, tn), jnp.float32)],
        ),
        compiler_params=pltpu.CompilerParams(
            dimension_semantics=("parallel", "parallel", "arbitrary")),
    )(x_p, wt_p, b_p)

    if not use_bn:
        return y_p[:N, :out_dim]

    # Training-mode BatchNorm1d over the N points, per feature.
    sums, sqs = pl.pallas_call(
        functools.partial(_bn_stats_kernel, tm=tm, n_valid=N),
        out_shape=(jax.ShapeDtypeStruct((1, Dp), jnp.float32),
                   jax.ShapeDtypeStruct((1, Dp), jnp.float32)),
        grid_spec=pltpu.PrefetchScalarGridSpec(
            num_scalar_prefetch=0,
            grid=(Mp // tm,),
            in_specs=[pl.BlockSpec((tm, Dp), lambda i: (i, 0))],
            out_specs=[pl.BlockSpec((1, Dp), lambda i: (0, 0)),
                       pl.BlockSpec((1, Dp), lambda i: (0, 0))],
        ),
        compiler_params=pltpu.CompilerParams(
            dimension_semantics=("arbitrary",)),
    )(y_p)

    mean = sums / float(N)
    var = jnp.maximum(sqs / float(N) - mean * mean, 0.0)   # biased variance
    rstd = jax.lax.rsqrt(var + eps)

    gamma_p = jnp.zeros((1, Dp), jnp.float32).at[0, :out_dim].set(
        gamma.astype(jnp.float32))
    beta_p = jnp.zeros((1, Dp), jnp.float32).at[0, :out_dim].set(
        beta.astype(jnp.float32))

    out_p = pl.pallas_call(
        functools.partial(_bn_apply_kernel,
                          fuse_relu=(not no_relu),
                          negative_slope=negative_slope),
        out_shape=jax.ShapeDtypeStruct((Mp, Dp), x.dtype),
        grid_spec=pltpu.PrefetchScalarGridSpec(
            num_scalar_prefetch=0,
            grid=(Mp // tm,),
            in_specs=[
                pl.BlockSpec((tm, Dp), lambda i: (i, 0)),
                pl.BlockSpec((1, Dp), lambda i: (0, 0)),
                pl.BlockSpec((1, Dp), lambda i: (0, 0)),
                pl.BlockSpec((1, Dp), lambda i: (0, 0)),
                pl.BlockSpec((1, Dp), lambda i: (0, 0)),
            ],
            out_specs=pl.BlockSpec((tm, Dp), lambda i: (i, 0)),
        ),
        compiler_params=pltpu.CompilerParams(
            dimension_semantics=("parallel",)),
    )(y_p, mean, rstd, gamma_p, beta_p)

    return out_p[:N, :out_dim]


class UnaryBlock:
    """JAX/Pallas counterpart of the PyTorch UnaryBlock."""

    def __init__(self, in_dim, out_dim, use_bn, bn_momentum, no_relu=False, *,
                 key, dtype=jnp.float32):
        self.in_dim = in_dim
        self.out_dim = out_dim
        self.use_bn = bool(use_bn)
        self.bn_momentum = bn_momentum   # running stats not tracked (see TODO above)
        self.no_relu = no_relu
        k1, k2 = jax.random.split(key)
        bound = 1.0 / math.sqrt(in_dim)
        self.weight = jax.random.uniform(k1, (out_dim, in_dim), dtype, -bound, bound)
        self.bias = jax.random.uniform(k2, (out_dim,), dtype, -bound, bound)
        if self.use_bn:
            self.gamma = jnp.ones((out_dim,), dtype)
            self.beta = jnp.zeros((out_dim,), dtype)
            self.eps = 1e-5
            self.bn_bias = None
        else:
            self.gamma = None
            self.beta = None
            self.eps = 1e-5
            self.bn_bias = jnp.zeros((out_dim,), dtype)

    def __call__(self, x, batch=None):
        return unary_block_forward(
            x, self.weight, self.bias,
            use_bn=self.use_bn, bn_bias=self.bn_bias,
            gamma=self.gamma, beta=self.beta, eps=self.eps,
            no_relu=self.no_relu)


# --------------------------------------------------------------------------
# Pure-JAX reference + demo
# --------------------------------------------------------------------------
def _reference(x, weight, bias, *, use_bn, bn_bias, gamma, beta, eps, no_relu):
    y = jnp.dot(x, weight.T, precision=jax.lax.Precision.HIGHEST) + bias
    if use_bn:
        mean = jnp.mean(y, axis=0, keepdims=True)
        var = jnp.mean((y - mean) ** 2, axis=0, keepdims=True)
        y = (y - mean) / jnp.sqrt(var + eps) * gamma + beta
    else:
        y = y + bn_bias
    if not no_relu:
        y = jnp.where(y >= 0.0, y, 0.1 * y)
    return y


if __name__ == "__main__":
    key = jax.random.PRNGKey(0)
    kx, kb1, kb2, kp1, kp2, kp3 = jax.random.split(key, 6)

    # Small shapes: N=16 stacked points, in_dim=32 -> out_dim=64.
    N, in_dim, out_dim = 16, 32, 64
    x = jax.random.normal(kx, (N, in_dim), dtype=jnp.float32)

    # Path 1: use_bn=False (bias replacement) + LeakyReLU.
    blk_bias = UnaryBlock(in_dim, out_dim, use_bn=False, bn_momentum=0.98, key=kb1)
    # Exercise the fused bn-bias add with a non-trivial value.
    blk_bias.bn_bias = 0.1 * jax.random.normal(kp1, (out_dim,), jnp.float32)
    out_bias = jax.block_until_ready(blk_bias(x))
    ref_bias = _reference(x, blk_bias.weight, blk_bias.bias, use_bn=False,
                          bn_bias=blk_bias.bn_bias, gamma=None, beta=None,
                          eps=1e-5, no_relu=False)
    assert out_bias.shape == (N, out_dim)
    assert jnp.allclose(out_bias, ref_bias, atol=1e-3, rtol=1e-3), "bias path mismatch"

    # Path 2: use_bn=True (training-mode batch statistics) + LeakyReLU.
    blk_bn = UnaryBlock(in_dim, out_dim, use_bn=True, bn_momentum=0.98, key=kb2)
    blk_bn.gamma = 1.0 + 0.1 * jax.random.normal(kp2, (out_dim,), jnp.float32)
    blk_bn.beta = 0.1 * jax.random.normal(kp3, (out_dim,), jnp.float32)
    out_bn = jax.block_until_ready(blk_bn(x))
    ref_bn = _reference(x, blk_bn.weight, blk_bn.bias, use_bn=True,
                        bn_bias=None, gamma=blk_bn.gamma, beta=blk_bn.beta,
                        eps=1e-5, no_relu=False)
    assert out_bn.shape == (N, out_dim)
    assert jnp.allclose(out_bn, ref_bn, atol=1e-3, rtol=1e-3), "bn path mismatch"

    print("KERNEL_OK")
</pallas_src>

<mosaic_0001>
module attributes {stable_mosaic.version = 11 : i64} {
  func.func @_linear_kernel(%arg0: i32, %arg1: i32, %arg2: i32, %arg3: memref<16x128xf32, #tpu.memory_space<vmem>>, %arg4: memref<128x128xf32, #tpu.memory_space<vmem>>, %arg5: memref<1x128xf32, #tpu.memory_space<vmem>>, %arg6: memref<16x128xf32, #tpu.memory_space<vmem>>, %arg7: memref<16x128xf32, #tpu.memory_space<vmem>>) attributes {dimension_semantics = [#tpu.dimension_semantics<parallel>, #tpu.dimension_semantics<parallel>, #tpu.dimension_semantics<arbitrary>], iteration_bounds = array<i64: 1, 1, 1>, scalar_prefetch = 0 : i64, scratch_operands = 1 : i64, tpu.core_type = #tpu.core_type<tc>, window_params = [{transform_indices = @transform_0, window_bounds = array<i64: 16, 128>}, {transform_indices = @transform_1, window_bounds = array<i64: 128, 128>}, {transform_indices = @transform_2, window_bounds = array<i64: 1, 128>}, {transform_indices = @transform_3, window_bounds = array<i64: 16, 128>}]} {
    %c0_i32 = arith.constant 0 : i32
    %0 = arith.cmpi eq, %arg2, %c0_i32 : i32
    %1 = arith.extui %0 : i1 to i32
    %c0_i32_0 = arith.constant 0 : i32
    %2 = arith.cmpi ne, %1, %c0_i32_0 : i32
    scf.if %2 {
      %cst_10 = arith.constant 0.000000e+00 : f32
      %12 = vector.broadcast %cst_10 : f32 to vector<16x128xf32>
      %c0_11 = arith.constant 0 : index
      %c0_12 = arith.constant 0 : index
      %13 = vector.load %arg7[%c0_11, %c0_12] : memref<16x128xf32, #tpu.memory_space<vmem>>, vector<16x128xf32>
      tpu.vector_store %arg7[%c0_11, %c0_12], %12 {strides = array<i32>} : memref<16x128xf32, #tpu.memory_space<vmem>>, vector<16x128xf32>,
    } else {
    }
    %c0 = arith.constant 0 : index
    %c0_1 = arith.constant 0 : index
    %3 = vector.load %arg7[%c0, %c0_1] : memref<16x128xf32, #tpu.memory_space<vmem>>, vector<16x128xf32>
    %c0_2 = arith.constant 0 : index
    %c0_3 = arith.constant 0 : index
    %4 = vector.load %arg3[%c0_2, %c0_3] : memref<16x128xf32, #tpu.memory_space<vmem>>, vector<16x128xf32>
    %c0_4 = arith.constant 0 : index
    %c0_5 = arith.constant 0 : index
    %5 = vector.load %arg4[%c0_4, %c0_5] : memref<128x128xf32, #tpu.memory_space<vmem>>, vector<128x128xf32>
    %cst = arith.constant dense<0.000000e+00> : vector<16x128xf32>
    %6 = tpu.matmul %4, %5, %cst {dimension_numbers = #tpu.dot_dimension_numbers<[1], [0], [0], [1], [0, 0, 1, 1], [], []>} : vector<16x128xf32>, vector<128x128xf32>, vector<16x128xf32> -> vector<16x128xf32>
    %7 = arith.addf %3, %6 : vector<16x128xf32>
    %c0_6 = arith.constant 0 : index
    %c0_7 = arith.constant 0 : index
    %8 = vector.load %arg7[%c0_6, %c0_7] : memref<16x128xf32, #tpu.memory_space<vmem>>, vector<16x128xf32>
    tpu.vector_store %arg7[%c0_6, %c0_7], %7 {strides = array<i32>} : memref<16x128xf32, #tpu.memory_space<vmem>>, vector<16x128xf32>,
    %c0_i32_8 = arith.constant 0 : i32
    %9 = arith.cmpi eq, %arg2, %c0_i32_8 : i32
    %10 = arith.extui %9 : i1 to i32
    %c0_i32_9 = arith.constant 0 : i32
    %11 = arith.cmpi ne, %10, %c0_i32_9 : i32
    scf.if %11 {
      %c0_10 = arith.constant 0 : index
      %c0_11 = arith.constant 0 : index
      %12 = vector.load %arg7[%c0_10, %c0_11] : memref<16x128xf32, #tpu.memory_space<vmem>>, vector<16x128xf32>
      %c0_12 = arith.constant 0 : index
      %c0_13 = arith.constant 0 : index
      %13 = vector.load %arg5[%c0_12, %c0_13] : memref<1x128xf32, #tpu.memory_space<vmem>>, vector<1x128xf32>
      %14 = vector.broadcast %13 : vector<1x128xf32> to vector<16x128xf32>
      %15 = arith.addf %12, %14 : vector<16x128xf32>
      %cst_14 = arith.constant 0.000000e+00 : f32
      %16 = vector.broadcast %cst_14 : f32 to vector<16x128xf32>
      %17 = arith.cmpf oge, %15, %16 : vector<16x128xf32>
      %cst_15 = arith.constant 1.000000e-01 : f32
      %18 = vector.broadcast %cst_15 : f32 to vector<16x128xf32>
      %19 = arith.mulf %18, %15 : vector<16x128xf32>
      %20 = arith.select %17, %15, %19 : vector<16x128xi1>, vector<16x128xf32>
      %c0_16 = arith.constant 0 : index
      %c0_17 = arith.constant 0 : index
      %21 = vector.load %arg6[%c0_16, %c0_17] : memref<16x128xf32, #tpu.memory_space<vmem>>, vector<16x128xf32>
      tpu.vector_store %arg6[%c0_16, %c0_17], %20 {strides = array<i32>} : memref<16x128xf32, #tpu.memory_space<vmem>>, vector<16x128xf32>,
    } else {
    }
    return
  }
  func.func @transform_0(%arg0: i32, %arg1: i32, %arg2: i32) -> (i32, i32) {
    %c0_i32 = arith.constant 0 : i32
    return %arg0, %arg2 : i32, i32
  }
  func.func @transform_1(%arg0: i32, %arg1: i32, %arg2: i32) -> (i32, i32) {
    %c0_i32 = arith.constant 0 : i32
    return %arg2, %arg1 : i32, i32
  }
  func.func @transform_2(%arg0: i32, %arg1: i32, %arg2: i32) -> (i32, i32) {
    %c0_i32 = arith.constant 0 : i32
    %c0_i32_0 = arith.constant 0 : i32
    return %c0_i32, %arg1 : i32, i32
  }
  func.func @transform_3(%arg0: i32, %arg1: i32, %arg2: i32) -> (i32, i32) {
    %c0_i32 = arith.constant 0 : i32
    return %arg0, %arg1 : i32, i32
  }
}

</mosaic_0001>

<llo_original>
// kernel: tpu_custom_call.1
$region0: #{tpu_custom_call.1}
  #allocation0 [shape = 'u32[]', space=smem, size = 0x4, offset = 0x4, fixed_abs, tag = 'smem constant byte address 0x4 - core index']
  #allocation1 [shape = 'u32[144,128]{1,0:T(1,128)}', space=vmem, size = 0x12000, scoped, tag = 'internal scratch']
  #allocation2 [shape = 'f32[16,128]{1,0:T(8,128)}', space=vmem, size = 0x2000, scoped, tag = 'scratch operand']
  %s0 = inlined_call_operand.hbm [shape: f32[16,128], index: 0, kind: input, shape index: {}]
  %s1 = inlined_call_operand.hbm [shape: f32[128,128], index: 1, kind: input, shape index: {}]
  %s2 = inlined_call_operand.vmem [shape: f32[1,128], index: 2, kind: input, shape index: {}]
  %s3 = inlined_call_operand.hbm [shape: f32[16,128], index: 3, kind: output, shape index: {}]
  %s4 = sld [smem:[#allocation0]]
  $region38: #{tpu_custom_call.1} parent=0
    _
  %s6 = ssub.s32 1, %s4
  %s7 = scalar_select 0, %s6, %s4
  $region1: #{tpu_custom_call.1} parent=0
    #allocation3 [shape = 'u8[8192]{0}', space=vmem, size = 0x2000, scoped, tag = 'input window, operand 0, single buffered']
    #allocation4 [shape = 's32[1]{0}', space=sflag, size = 0x4, scoped, tag = 'scoped memory for tpu_custom_call.1']
    #allocation5 [shape = 's32[1]{0}', space=sflag, size = 0x4, scoped, tag = 'scoped memory for tpu_custom_call.1']
    #allocation6 [shape = 'u8[65536]{0}', space=vmem, size = 0x10000, scoped, tag = 'input window, operand 1, single buffered']
    #allocation7 [shape = 's32[1]{0}', space=sflag, size = 0x4, scoped, tag = 'scoped memory for tpu_custom_call.1']
    #allocation8 [shape = 'u8[8192]{0}', space=vmem, size = 0x2000, scoped, tag = 'output window, operand 0, single buffered']
    %8 = vsyncpa [#allocation4], 0
    %9 = vsyncpa [#allocation7], 0
    %10 = vsyncpa [#allocation5], 0
    // Predicated region
    $region2: #{tpu_custom_call.1} parent=1 // pred_check
      _
    $region3: #{tpu_custom_call.1} parent=1 // pred_check_branch
      %12 = sbr.rel (0) target = $region5
    $region4: #{tpu_custom_call.1} parent=1 // pred_region
      %s14 = ssub.s32 256, 256
      %15 = vsyncadd [#allocation4], %s14
      %s16 = sshll.u32 [#allocation3], 4
      %s17 = int_to_ptr.vmem [resolvable:$true] %s16
      %22 = dma.hbm_to_vmem [thread:$0]  %s0, 256, %s17, [#allocation4], 128, 128, 8
    $region5: #{tpu_custom_call.1} parent=1 // pred_fallthru
      _
    // Predicated region
    $region6: #{tpu_custom_call.1} parent=1 // pred_check
      _
    $region7: #{tpu_custom_call.1} parent=1 // pred_check_branch
      %24 = sbr.rel (0) target = $region9
    $region8: #{tpu_custom_call.1} parent=1 // pred_region
      %s26 = ssub.s32 2048, 2048
      %27 = vsyncadd [#allocation7], %s26
      %s28 = sshll.u32 [#allocation6], 4
      %s29 = int_to_ptr.vmem [resolvable:$true] %s28
      %34 = dma.hbm_to_vmem [thread:$0]  %s1, 2048, %s29, [#allocation7], 128, 128, 8
    $region9: #{tpu_custom_call.1} parent=1 // pred_fallthru
      _
    // Predicated region
    $region10: #{tpu_custom_call.1} parent=1 // pred_check
      _
    $region11: #{tpu_custom_call.1} parent=1 // pred_check_branch
      %36 = sbr.rel (0) target = $region13
    $region12: #{tpu_custom_call.1} parent=1 // pred_region
      _
    $region13: #{tpu_custom_call.1} parent=1 // pred_fallthru
      _
    // Predicated region
    $region14: #{tpu_custom_call.1} parent=1 // pred_check
      _
    $region15: #{tpu_custom_call.1} parent=1 // pred_check_branch
      %38 = sbr.rel (0) target = $region17
    $region16: #{tpu_custom_call.1} parent=1 // pred_region
      %39 = dma.done [#allocation4], 256
    $region17: #{tpu_custom_call.1} parent=1 // pred_fallthru
      _
    // Predicated region
    $region18: #{tpu_custom_call.1} parent=1 // pred_check
      _
    $region19: #{tpu_custom_call.1} parent=1 // pred_check_branch
      %41 = sbr.rel (0) target = $region21
    $region20: #{tpu_custom_call.1} parent=1 // pred_region
      %42 = dma.done [#allocation7], 2048
    $region21: #{tpu_custom_call.1} parent=1 // pred_fallthru
      _
    %p43 = scmp.eq.s32.totalorder 0, 0
    // Predicated region
    $region22: #{tpu_custom_call.1} parent=1 // pred_check
      %p44 = pneg %p43
    $region23: #{tpu_custom_call.1} parent=1 // pred_check_branch
      %46 = sbr.rel (%p44) target = $region25
    $region24: #{tpu_custom_call.1} parent=1 // pred_region
      %47 = vst [vmem:[#allocation2] sm:$0xff] 0.0
      %48 = vst [vmem:[#allocation2 + $0x8] sm:$0xff] 0.0
    $region25: #{tpu_custom_call.1} parent=1 // pred_fallthru
      _
    %v49 = vld [vmem:[#allocation2] sm:$0xff]
    %v50 = vld [vmem:[#allocation2 + $0x8] sm:$0xff]
    %v51 = vld [vmem:[#allocation3] sm:$0xff]
    %v52 = vld [vmem:[#allocation3 + $0x8] sm:$0xff]
    %v53 = vld [vmem:[#allocation6] sm:$0xff]
    %v54 = vld [vmem:[#allocation6 + $0x8] sm:$0xff]
    %v55 = vld [vmem:[#allocation6 + $0x10] sm:$0xff]
    %v56 = vld [vmem:[#allocation6 + $0x18] sm:$0xff]
    %v57 = vld [vmem:[#allocation6 + $0x20] sm:$0xff]
    %v58 = vld [vmem:[#allocation6 + $0x28] sm:$0xff]
    %v59 = vld [vmem:[#allocation6 + $0x30] sm:$0xff]
    %v60 = vld [vmem:[#allocation6 + $0x38] sm:$0xff]
    %v61 = vld [vmem:[#allocation6 + $0x40] sm:$0xff]
    %v62 = vld [vmem:[#allocation6 + $0x48] sm:$0xff]
    %v63 = vld [vmem:[#allocation6 + $0x50] sm:$0xff]
    %v64 = vld [vmem:[#allocation6 + $0x58] sm:$0xff]
    %v65 = vld [vmem:[#allocation6 + $0x60] sm:$0xff]
    %v66 = vld [vmem:[#allocation6 + $0x68] sm:$0xff]
    %v67 = vld [vmem:[#allocation6 + $0x70] sm:$0xff]
    %v68 = vld [vmem:[#allocation6 + $0x78] sm:$0xff]
    %69 = vmatprep.subr.mxu0 0.0
    %70 = vmatpush1.msra.mxu0 %v53
    %71 = vmatprep.subr.mxu0 0.0
    %72 = vmatpush1.msra.mxu0 %v54
    %73 = vmatprep.subr.mxu0 0.0
    %74 = vmatpush1.msra.mxu0 %v55
    %75 = vmatprep.subr.mxu0 0.0
    %76 = vmatpush1.msra.mxu0 %v56
    %77 = vmatprep.subr.mxu0 0.0
    %78 = vmatpush1.msra.mxu0 %v57
    %79 = vmatprep.subr.mxu0 0.0
    %80 = vmatpush1.msra.mxu0 %v58
    %81 = vmatprep.subr.mxu0 0.0
    %82 = vmatpush1.msra.mxu0 %v59
    %83 = vmatprep.subr.mxu0 0.0
    %84 = vmatpush1.msra.mxu0 %v60
    %85 = vmatprep.subr.mxu0 0.0
    %86 = vmatpush1.msra.mxu0 %v61
    %87 = vmatprep.subr.mxu0 0.0
    %88 = vmatpush1.msra.mxu0 %v62
    %89 = vmatprep.subr.mxu0 0.0
    %90 = vmatpush1.msra.mxu0 %v63
    %91 = vmatprep.subr.mxu0 0.0
    %92 = vmatpush1.msra.mxu0 %v64
    %93 = vmatprep.subr.mxu0 0.0
    %94 = vmatpush1.msra.mxu0 %v65
    %95 = vmatprep.subr.mxu0 0.0
    %96 = vmatpush1.msra.mxu0 %v66
    %97 = vmatprep.subr.mxu0 0.0
    %98 = vmatpush1.msra.mxu0 %v67
    %99 = vmatprep.subr.mxu0 0.0
    %100 = vmatpush1.msra.mxu0 %v68
    %101 = vmatprep.subr.mxu0 0.0
    %102 = vmatpush1.msra.mxu0 0.0
    %103 = vmatprep.subr.mxu0 0.0
    %104 = vmatpush1.msra.mxu0 0.0
    %105 = vmatprep.subr.mxu0 0.0
    %106 = vmatpush1.msra.mxu0 0.0
    %107 = vmatprep.subr.mxu0 0.0
    %108 = vmatpush1.msra.mxu0 0.0
    %109 = vmatprep.subr.mxu0 0.0
    %110 = vmatpush1.msra.mxu0 0.0
    %111 = vmatprep.subr.mxu0 0.0
    %112 = vmatpush1.msra.mxu0 0.0
    %113 = vmatprep.subr.mxu0 0.0
    %114 = vmatpush1.msra.mxu0 0.0
    %115 = vmatprep.subr.mxu0 0.0
    %116 = vmatpush1.msra.mxu0 0.0
    %117 = vmatprep.subr.mxu0 0.0
    %118 = vmatpush1.msra.mxu0 0.0
    %119 = vmatprep.subr.mxu0 0.0
    %120 = vmatpush1.msra.mxu0 0.0
    %121 = vmatprep.subr.mxu0 0.0
    %122 = vmatpush1.msra.mxu0 0.0
    %123 = vmatprep.subr.mxu0 0.0
    %124 = vmatpush1.msra.mxu0 0.0
    %125 = vmatprep.subr.mxu0 0.0
    %126 = vmatpush1.msra.mxu0 0.0
    %127 = vmatprep.subr.mxu0 0.0
    %128 = vmatpush1.msra.mxu0 0.0
    %129 = vmatprep.subr.mxu0 0.0
    %130 = vmatpush1.msra.mxu0 0.0
    %131 = vmatprep.subr.mxu0 0.0
    %132 = vmatpush1.msra.mxu0 0.0
    %133 = vmatprep.mubr.f32.mxu0 0.0
    %134 = vmatmul.mubr.f32.gmra.mrb[0].mxu0 %v51
    %v135 = vpop.f32.mrb[0].mxu0
    %v136 = vadd.f32 0.0, %v135
    %v137 = vpop.f32.mrb[0].mxu0
    %138 = vmatprep.mubr.f32.mxu0 0.0
    %139 = vmatmul.mubr.f32.gmra.mrb[0].mxu0 %v52
    %v140 = vpop.f32.mrb[0].mxu0
    %v141 = vadd.f32 0.0, %v140
    %v142 = vpop.f32.mrb[0].mxu0
    %143 = vdwg.mxu0
    %v144 = vadd.f32 %v49, %v136
    %v145 = vadd.f32 %v50, %v141
    %146 = vst [vmem:[#allocation2] sm:$0xff] %v144
    %147 = vst [vmem:[#allocation2 + $0x8] sm:$0xff] %v145
    // Predicated region
    $region26: #{tpu_custom_call.1} parent=1 // pred_check
      %p148 = pneg %p43
    $region27: #{tpu_custom_call.1} parent=1 // pred_check_branch
      %150 = sbr.rel (%p148) target = $region29
    $region28: #{tpu_custom_call.1} parent=1 // pred_region
      %v151 = vld [vmem:[#allocation2] sm:$0xff]
      %v152 = vld [vmem:[#allocation2 + $0x8] sm:$0xff]
      %v153 = vld [vmem:[%s2] sm:$0x1]
      %v155 = vlaneseq
      %v156 = vshrl.u32 %v155, 7
      %v157 = vsub.s32 0, %v156
      %v158 = vrot.slane %v153, %v157
      %v160 = vadd.f32 %v151, %v158
      %v161 = vadd.f32 %v152, %v158
      %vm162 = vcmp.ge.f32.partialorder %v160, 0.0
      %vm163 = vcmp.ge.f32.partialorder %v161, 0.0
      %v164 = vmul.f32 %v160, 0.1
      %v165 = vmul.f32 %v161, 0.1
      %v166 = vsel %vm162, %v160, %v164
      %v167 = vsel %vm163, %v161, %v165
      %168 = vst [vmem:[#allocation8] sm:$0xff] %v166
      %169 = vst [vmem:[#allocation8 + $0x8] sm:$0xff] %v167
    $region29: #{tpu_custom_call.1} parent=1 // pred_fallthru
      _
    // Predicated region
    $region30: #{tpu_custom_call.1} parent=1 // pred_check
      _
    $region31: #{tpu_custom_call.1} parent=1 // pred_check_branch
      %171 = sbr.rel (0) target = $region33
    $region32: #{tpu_custom_call.1} parent=1 // pred_region
      %s173 = ssub.s32 256, 256
      %174 = vsyncadd [#allocation5], %s173
      %s175 = sshll.u32 [#allocation8], 4
      %s176 = int_to_ptr.vmem [resolvable:$true] %s175
      %181 = dma.vmem_to_hbm [thread:$0]  %s176, 256, %s3, [#allocation5], 128, 128, 8
    $region33: #{tpu_custom_call.1} parent=1 // pred_fallthru
      _
    // Predicated region
    $region34: #{tpu_custom_call.1} parent=1 // pred_check
      _
    $region35: #{tpu_custom_call.1} parent=1 // pred_check_branch
      %183 = sbr.rel (0) target = $region37
    $region36: #{tpu_custom_call.1} parent=1 // pred_region
      %184 = dma.done [#allocation5], 256
    $region37: #{tpu_custom_call.1} parent=1 // pred_fallthru
      _
    %185 = vsyncpa [#allocation4], 1
    %186 = vsyncpa [#allocation7], 1
    %187 = vsyncpa [#allocation5], 1

</llo_original>
